<compile_context>
chip_gen: v6e
topology: v6e:2x2x1
jax: 0.10.0
libtpu: 0.0.40
codegen_flags: <defaults>
</compile_context>

<pallas_src>
import jax
import jax.numpy as jnp
from jax.experimental import pallas as pl
from jax.experimental.pallas import tpu as pltpu


# ---------------------------------------------------------------------------
# tile-selection helper
# ---------------------------------------------------------------------------
def _pick_tile(n: int, cap: int, quantum: int) -> int:
    """Largest t <= cap with n % t == 0 and t % quantum == 0 (or t == n)."""
    if n <= cap:
        return n
    t = (cap // quantum) * quantum
    while t >= quantum:
        if n % t == 0:
            return t
        t -= quantum
    return n  # no clean divisor: fall back to the full dimension


# ---------------------------------------------------------------------------
# Fused normalized-linear + DistCrossEntropy kernel
# ---------------------------------------------------------------------------
def _fused_pfc_ce_kernel(e_ref, wt_ref, lab_ref, loss_ref, m_sc, s_sc, xl_sc):
    # e_ref : (tm, E) f32  normalized embeddings (resident across the class sweep)
    # wt_ref: (E, tn) f32  normalized weight, pre-transposed (canonical MXU rhs layout)
    # lab_ref: (tm, 1) int32 local label (-1 = not in this class partition)
    # loss_ref: (tm, 1) f32  per-row log-prob at the label (written once at finalize)
    ci = pl.program_id(1)
    tn = wt_ref.shape[1]

    @pl.when(ci == 0)
    def _():
        m_sc[...] = jnp.full_like(m_sc, -jnp.inf)   # running row max
        s_sc[...] = jnp.zeros_like(s_sc)            # running sum(exp(x - m))
        xl_sc[...] = jnp.zeros_like(xl_sc)          # raw logit at the label column

    # --- logits tile on the MXU, then is_normlize==1 clamp(-1, 1) ---
    x = jnp.dot(e_ref[...], wt_ref[...], preferred_element_type=jnp.float32)
    x = jnp.clip(x, -1.0, 1.0)
    # TODO(synk): margin_softmax(x, labels) would be applied here; identity.

    lab = lab_ref[...]                               # (tm, 1) int32

    # --- online logsumexp over the class axis ---
    m_prev = m_sc[...]
    m_new = jnp.maximum(m_prev, jnp.max(x, axis=1, keepdims=True))
    s_sc[...] = s_sc[...] * jnp.exp(m_prev - m_new) + \
        jnp.sum(jnp.exp(x - m_new), axis=1, keepdims=True)
    m_sc[...] = m_new

    # --- pick out the raw logit at the label column if it lives in this tile ---
    col = jax.lax.broadcasted_iota(jnp.int32, x.shape, 1) + ci * tn
    xl_sc[...] += jnp.sum(jnp.where(col == lab, x, 0.0), axis=1, keepdims=True)

    @pl.when(ci == pl.num_programs(1) - 1)
    def _():
        # torch: loss = probs.gather(label) for label != -1 (else 0);
        #        loss.clamp_min_(1e-30).log_()  ==  max(log p, log(1e-30)),
        #        and log(1e-30) for invalid (-1) rows.
        floor = jnp.log(jnp.float32(1e-30))
        log_p = xl_sc[...] - m_sc[...] - jnp.log(s_sc[...])
        loss_ref[...] = jnp.where(lab != -1, jnp.maximum(log_p, floor), floor)


def _fused_pfc_ce(norm_emb, norm_weight_t, label, *,
                  tm: int | None = None, tn: int | None = None,
                  target_tile_bytes: int = 8 << 20):
    """clamp(norm_emb @ norm_weight_t, -1, 1) -> DistCrossEntropy, logits never hit HBM.

    norm_emb     : (B, E) f32
    norm_weight_t: (E, C) f32  (normalized weight, already transposed)
    label        : (B, 1) int32, -1 = not in this partition
    returns per-row log-prob (B, 1) f32.
    """
    B, E = norm_emb.shape
    E2, C = norm_weight_t.shape
    assert E == E2 and label.shape == (B, 1)

    if tm is None:
        tm = _pick_tile(B, 256, 8)
    if tn is None:
        cap = max(128, min(4096, (target_tile_bytes // max(1, E * 4)) // 128 * 128))
        tn = _pick_tile(C, cap, 128)
    assert B % tm == 0 and C % tn == 0, (tm, tn, B, C)

    # VMEM budget: double-buffered emb + weight tiles, labels/out, scratch, headroom.
    need = 2 * (tm * E + E * tn + 2 * tm) * 4 + 3 * tm * 4 + (4 << 20)
    vmem_limit = int(min(max(need, 32 << 20), 64 << 20))

    return pl.pallas_call(
        _fused_pfc_ce_kernel,
        out_shape=jax.ShapeDtypeStruct((B, 1), jnp.float32),
        grid_spec=pltpu.PrefetchScalarGridSpec(
            num_scalar_prefetch=0,
            grid=(B // tm, C // tn),
            in_specs=[
                pl.BlockSpec((tm, E), lambda bi, ci: (bi, 0)),   # resident across ci
                pl.BlockSpec((E, tn), lambda bi, ci: (0, ci)),
                pl.BlockSpec((tm, 1), lambda bi, ci: (bi, 0)),
            ],
            out_specs=pl.BlockSpec((tm, 1), lambda bi, ci: (bi, 0)),
            scratch_shapes=[pltpu.VMEM((tm, 1), jnp.float32)] * 3,
        ),
        compiler_params=pltpu.CompilerParams(
            dimension_semantics=("parallel", "arbitrary"),
            vmem_limit_bytes=vmem_limit,
        ),
    )(norm_emb, norm_weight_t, label)


# ---------------------------------------------------------------------------
# Standalone DistCrossEntropy forward on precomputed logits (module parity)
# ---------------------------------------------------------------------------
def _dist_ce_kernel(logits_ref, label_ref, loss_ref, m_sc, s_sc, xl_sc):
    ci = pl.program_id(1)
    tc = logits_ref.shape[1]

    @pl.when(ci == 0)
    def _():
        m_sc[...] = jnp.full_like(m_sc, -jnp.inf)
        s_sc[...] = jnp.zeros_like(s_sc)
        xl_sc[...] = jnp.zeros_like(xl_sc)

    x = logits_ref[...].astype(jnp.float32)
    lab = label_ref[...]

    m_prev = m_sc[...]
    m_new = jnp.maximum(m_prev, jnp.max(x, axis=1, keepdims=True))
    s_sc[...] = s_sc[...] * jnp.exp(m_prev - m_new) + \
        jnp.sum(jnp.exp(x - m_new), axis=1, keepdims=True)
    m_sc[...] = m_new

    col = jax.lax.broadcasted_iota(jnp.int32, x.shape, 1) + ci * tc
    xl_sc[...] += jnp.sum(jnp.where(col == lab, x, 0.0), axis=1, keepdims=True)

    @pl.when(ci == pl.num_programs(1) - 1)
    def _():
        floor = jnp.log(jnp.float32(1e-30))
        log_p = xl_sc[...] - m_sc[...] - jnp.log(s_sc[...])
        loss_ref[...] = jnp.where(lab != -1, jnp.maximum(log_p, floor), floor)


def dist_cross_entropy(logits: jax.Array, label: jax.Array, *,
                       tb: int | None = None, tc: int | None = None,
                       target_tile_bytes: int = 8 << 20) -> jax.Array:
    """Pallas equivalent of DistCrossEntropy.forward (single device)."""
    B, C = logits.shape
    assert label.shape == (B, 1), label.shape
    label = label.astype(jnp.int32)

    itemsize = jnp.dtype(logits.dtype).itemsize
    sub = {4: 8, 2: 16, 1: 32}.get(itemsize, 8)

    if tc is None:
        tc = _pick_tile(C, 8192, 128)
    if tb is None:
        cap = max(sub, min(1024, target_tile_bytes // max(1, tc * itemsize)))
        cap = max(sub, (cap // sub) * sub)
        tb = _pick_tile(B, cap, sub)
    assert B % tb == 0 and C % tc == 0, (tb, tc, B, C)

    need = 2 * tb * tc * itemsize + 4 * tb * 4 + 3 * tb * 4 + (4 << 20)
    vmem_limit = int(min(max(need, 32 << 20), 64 << 20))

    per_row_log = pl.pallas_call(
        _dist_ce_kernel,
        out_shape=jax.ShapeDtypeStruct((B, 1), jnp.float32),
        grid_spec=pltpu.PrefetchScalarGridSpec(
            num_scalar_prefetch=0,
            grid=(B // tb, C // tc),
            in_specs=[
                pl.BlockSpec((tb, tc), lambda bi, ci: (bi, ci)),
                pl.BlockSpec((tb, 1), lambda bi, ci: (bi, 0)),
            ],
            out_specs=pl.BlockSpec((tb, 1), lambda bi, ci: (bi, 0)),
            scratch_shapes=[pltpu.VMEM((tb, 1), jnp.float32)] * 3,
        ),
        compiler_params=pltpu.CompilerParams(
            dimension_semantics=("parallel", "arbitrary"),
            vmem_limit_bytes=vmem_limit,
        ),
    )(logits, label)

    return -jnp.mean(per_row_log)


# ---------------------------------------------------------------------------
# PartialFC_V2.forward (single device, sample_rate=1, is_normlize=1, fp16=False)
# ---------------------------------------------------------------------------
def partial_fc_v2_forward(local_embeddings, local_labels, weight, *,
                          class_start: int = 0, tm=None, tn=None):
    num_local = weight.shape[0]
    lab = local_labels.reshape(-1).astype(jnp.int32)
    valid = (lab >= class_start) & (lab < class_start + num_local)
    lab_local = jnp.where(valid, lab - class_start, -1).reshape(-1, 1)

    # F.normalize(x) = x / max(||x||_2, 1e-12)  (tiny O(B*E + C*E) glue; XLA fuses
    # the scale + transpose into one HBM pass producing the (E, C) rhs layout).
    ne = local_embeddings / jnp.maximum(
        jnp.linalg.norm(local_embeddings, axis=1, keepdims=True), 1e-12)
    nw_t = (weight / jnp.maximum(
        jnp.linalg.norm(weight, axis=1, keepdims=True), 1e-12)).T

    per_row_log = _fused_pfc_ce(ne.astype(jnp.float32), nw_t.astype(jnp.float32),
                                lab_local, tm=tm, tn=tn)
    # mean over batch, negate  (== loss.clamp_min_(1e-30).log_().mean() * -1)
    return -jnp.mean(per_row_log)


# ---------------------------------------------------------------------------
# plain-JAX references
# ---------------------------------------------------------------------------
def _reference_ce(logits, label):
    x = logits.astype(jnp.float32)
    x = x - jnp.max(x, axis=1, keepdims=True)
    e = jnp.exp(x)
    probs = e / jnp.sum(e, axis=1, keepdims=True)
    g = jnp.take_along_axis(probs, jnp.clip(label, 0, None), axis=1)
    p = jnp.where(label != -1, g, 0.0)
    return -jnp.mean(jnp.log(jnp.maximum(p, 1e-30)))


def _reference_forward(emb, labels, weight, class_start=0):
    num_local = weight.shape[0]
    lab = labels.reshape(-1).astype(jnp.int32)
    valid = (lab >= class_start) & (lab < class_start + num_local)
    lab_local = jnp.where(valid, lab - class_start, -1).reshape(-1, 1)
    ne = emb / jnp.maximum(jnp.linalg.norm(emb, axis=1, keepdims=True), 1e-12)
    nw = weight / jnp.maximum(jnp.linalg.norm(weight, axis=1, keepdims=True), 1e-12)
    logits = jnp.clip(ne @ nw.T, -1.0, 1.0)
    return _reference_ce(logits, lab_local)


if __name__ == "__main__":
    key = jax.random.PRNGKey(0)
    k1, k2, k3, k4 = jax.random.split(key, 4)

    # small PartialFC shapes: batch=64, embedding=128, local class partition=512
    B, E, C = 64, 128, 512

    emb = jax.random.normal(k1, (B, E), dtype=jnp.float32)
    weight = jax.random.normal(k2, (C, E), dtype=jnp.float32) * 0.01
    # labels in [0, 2C): roughly half fall outside this rank's partition (-> -1)
    labels = jax.random.randint(k3, (B,), 0, 2 * C, dtype=jnp.int32)

    ref = _reference_forward(emb, labels, weight)

    # --- fused forward: normalized linear + clamp + CE, auto tiles (grid (1,1)) ---
    loss = partial_fc_v2_forward(emb, labels, weight)
    jax.block_until_ready(loss)
    assert jnp.allclose(loss, ref, rtol=1e-4, atol=1e-4), (loss, ref)

    # --- fused forward, forced multi-tile class streaming (grid (2, 4)) ---
    loss_t = partial_fc_v2_forward(emb, labels, weight, tm=32, tn=128)
    jax.block_until_ready(loss_t)
    assert jnp.allclose(loss_t, ref, rtol=1e-4, atol=1e-4), (loss_t, ref)

    # --- standalone DistCrossEntropy kernel on precomputed logits ---
    logits = jax.random.normal(k4, (B, C), dtype=jnp.float32) * 4.0
    lab = jax.random.randint(k1, (B, 1), 0, C, dtype=jnp.int32)
    drop = jax.random.bernoulli(k2, 0.25, (B, 1))
    label = jnp.where(drop, jnp.int32(-1), lab)

    l_auto = dist_cross_entropy(logits, label)                   # grid (1, 1)
    l_tiled = dist_cross_entropy(logits, label, tb=32, tc=128)   # grid (2, 4)
    jax.block_until_ready((l_auto, l_tiled))
    ref_ce = _reference_ce(logits, label)
    assert jnp.allclose(l_auto, ref_ce, rtol=1e-4, atol=1e-4), (l_auto, ref_ce)
    assert jnp.allclose(l_tiled, ref_ce, rtol=1e-4, atol=1e-4), (l_tiled, ref_ce)

    print("KERNEL_OK")
</pallas_src>

<mosaic_0001>
module attributes {stable_mosaic.version = 11 : i64} {
  func.func @_fused_pfc_ce_kernel(%arg0: i32, %arg1: i32, %arg2: memref<64x128xf32, #tpu.memory_space<vmem>>, %arg3: memref<128x512xf32, #tpu.memory_space<vmem>>, %arg4: memref<64x1xi32, #tpu.memory_space<vmem>>, %arg5: memref<64x1xf32, #tpu.memory_space<vmem>>, %arg6: memref<64x1xf32, #tpu.memory_space<vmem>>, %arg7: memref<64x1xf32, #tpu.memory_space<vmem>>, %arg8: memref<64x1xf32, #tpu.memory_space<vmem>>) attributes {dimension_semantics = [#tpu.dimension_semantics<parallel>, #tpu.dimension_semantics<arbitrary>], iteration_bounds = array<i64: 1, 1>, scalar_prefetch = 0 : i64, scratch_operands = 3 : i64, tpu.core_type = #tpu.core_type<tc>, window_params = [{transform_indices = @transform_0, window_bounds = array<i64: 64, 128>}, {transform_indices = @transform_1, window_bounds = array<i64: 128, 512>}, {transform_indices = @transform_2, window_bounds = array<i64: 64, 1>}, {transform_indices = @transform_3, window_bounds = array<i64: 64, 1>}]} {
    %c0_i32 = arith.constant 0 : i32
    %0 = arith.cmpi eq, %arg1, %c0_i32 : i32
    %1 = arith.extui %0 : i1 to i32
    %c0_i32_0 = arith.constant 0 : i32
    %2 = arith.cmpi ne, %1, %c0_i32_0 : i32
    scf.if %2 {
      %cst_26 = arith.constant 0xFF800000 : f32
      %43 = vector.broadcast %cst_26 : f32 to vector<64x1xf32>
      %c0_27 = arith.constant 0 : index
      %c0_28 = arith.constant 0 : index
      %44 = vector.load %arg6[%c0_27, %c0_28] : memref<64x1xf32, #tpu.memory_space<vmem>>, vector<64x1xf32>
      tpu.vector_store %arg6[%c0_27, %c0_28], %43 {strides = array<i32>} : memref<64x1xf32, #tpu.memory_space<vmem>>, vector<64x1xf32>,
      %cst_29 = arith.constant 0.000000e+00 : f32
      %45 = vector.broadcast %cst_29 : f32 to vector<64x1xf32>
      %c0_30 = arith.constant 0 : index
      %c0_31 = arith.constant 0 : index
      %46 = vector.load %arg7[%c0_30, %c0_31] : memref<64x1xf32, #tpu.memory_space<vmem>>, vector<64x1xf32>
      tpu.vector_store %arg7[%c0_30, %c0_31], %45 {strides = array<i32>} : memref<64x1xf32, #tpu.memory_space<vmem>>, vector<64x1xf32>,
      %cst_32 = arith.constant 0.000000e+00 : f32
      %47 = vector.broadcast %cst_32 : f32 to vector<64x1xf32>
      %c0_33 = arith.constant 0 : index
      %c0_34 = arith.constant 0 : index
      %48 = vector.load %arg8[%c0_33, %c0_34] : memref<64x1xf32, #tpu.memory_space<vmem>>, vector<64x1xf32>
      tpu.vector_store %arg8[%c0_33, %c0_34], %47 {strides = array<i32>} : memref<64x1xf32, #tpu.memory_space<vmem>>, vector<64x1xf32>,
    } else {
    }
    %c0 = arith.constant 0 : index
    %c0_1 = arith.constant 0 : index
    %3 = vector.load %arg2[%c0, %c0_1] : memref<64x128xf32, #tpu.memory_space<vmem>>, vector<64x128xf32>
    %c0_2 = arith.constant 0 : index
    %c0_3 = arith.constant 0 : index
    %4 = vector.load %arg3[%c0_2, %c0_3] : memref<128x512xf32, #tpu.memory_space<vmem>>, vector<128x512xf32>
    %cst = arith.constant dense<0.000000e+00> : vector<64x512xf32>
    %5 = tpu.matmul %3, %4, %cst {dimension_numbers = #tpu.dot_dimension_numbers<[1], [0], [0], [1], [0, 0, 1, 1], [], []>} : vector<64x128xf32>, vector<128x512xf32>, vector<64x512xf32> -> vector<64x512xf32>
    %cst_4 = arith.constant -1.000000e+00 : f32
    %cst_5 = arith.constant 1.000000e+00 : f32
    %6 = vector.broadcast %cst_4 : f32 to vector<64x512xf32>
    %7 = arith.maximumf %6, %5 : vector<64x512xf32>
    %8 = vector.broadcast %cst_5 : f32 to vector<64x512xf32>
    %9 = arith.minimumf %8, %7 : vector<64x512xf32>
    %c0_6 = arith.constant 0 : index
    %c0_7 = arith.constant 0 : index
    %10 = vector.load %arg4[%c0_6, %c0_7] : memref<64x1xi32, #tpu.memory_space<vmem>>, vector<64x1xi32>
    %c0_8 = arith.constant 0 : index
    %c0_9 = arith.constant 0 : index
    %11 = vector.load %arg6[%c0_8, %c0_9] : memref<64x1xf32, #tpu.memory_space<vmem>>, vector<64x1xf32>
    %cst_10 = arith.constant dense<0xFF800000> : vector<64xf32>
    %12 = vector.multi_reduction <maximumf>, %9, %cst_10 [1] : vector<64x512xf32> to vector<64xf32>
    %13 = vector.shape_cast %12 : vector<64xf32> to vector<64x1xf32>
    %14 = arith.maximumf %11, %13 : vector<64x1xf32>
    %c0_11 = arith.constant 0 : index
    %c0_12 = arith.constant 0 : index
    %15 = vector.load %arg7[%c0_11, %c0_12] : memref<64x1xf32, #tpu.memory_space<vmem>>, vector<64x1xf32>
    %16 = arith.subf %11, %14 : vector<64x1xf32>
    %17 = math.exp %16 : vector<64x1xf32>
    %18 = arith.mulf %15, %17 : vector<64x1xf32>
    %19 = vector.broadcast %14 : vector<64x1xf32> to vector<64x512xf32>
    %20 = arith.subf %9, %19 : vector<64x512xf32>
    %21 = math.exp %20 : vector<64x512xf32>
    %cst_13 = arith.constant dense<0.000000e+00> : vector<64xf32>
    %22 = vector.multi_reduction <add>, %21, %cst_13 [1] : vector<64x512xf32> to vector<64xf32>
    %23 = vector.shape_cast %22 : vector<64xf32> to vector<64x1xf32>
    %24 = arith.addf %18, %23 : vector<64x1xf32>
    %c0_14 = arith.constant 0 : index
    %c0_15 = arith.constant 0 : index
    %25 = vector.load %arg7[%c0_14, %c0_15] : memref<64x1xf32, #tpu.memory_space<vmem>>, vector<64x1xf32>
    tpu.vector_store %arg7[%c0_14, %c0_15], %24 {strides = array<i32>} : memref<64x1xf32, #tpu.memory_space<vmem>>, vector<64x1xf32>,
    %c0_16 = arith.constant 0 : index
    %c0_17 = arith.constant 0 : index
    %26 = vector.load %arg6[%c0_16, %c0_17] : memref<64x1xf32, #tpu.memory_space<vmem>>, vector<64x1xf32>
    tpu.vector_store %arg6[%c0_16, %c0_17], %14 {strides = array<i32>} : memref<64x1xf32, #tpu.memory_space<vmem>>, vector<64x1xf32>,
    %27 = tpu.iota {dimensions = array<i32: 1>} : vector<64x512xi32>
    %c512_i32 = arith.constant 512 : i32
    %28 = arith.muli %arg1, %c512_i32 : i32
    %29 = vector.broadcast %28 : i32 to vector<64x512xi32>
    %30 = arith.addi %27, %29 : vector<64x512xi32>
    %c0_18 = arith.constant 0 : index
    %c0_19 = arith.constant 0 : index
    %31 = vector.load %arg8[%c0_18, %c0_19] : memref<64x1xf32, #tpu.memory_space<vmem>>, vector<64x1xf32>
    %32 = vector.broadcast %10 : vector<64x1xi32> to vector<64x512xi32>
    %33 = arith.cmpi eq, %30, %32 : vector<64x512xi32>
    %cst_20 = arith.constant 0.000000e+00 : f32
    %34 = vector.broadcast %cst_20 : f32 to vector<64x512xf32>
    %35 = arith.select %33, %9, %34 : vector<64x512xi1>, vector<64x512xf32>
    %cst_21 = arith.constant dense<0.000000e+00> : vector<64xf32>
    %36 = vector.multi_reduction <add>, %35, %cst_21 [1] : vector<64x512xf32> to vector<64xf32>
    %37 = vector.shape_cast %36 : vector<64xf32> to vector<64x1xf32>
    %38 = arith.addf %31, %37 : vector<64x1xf32>
    %c0_22 = arith.constant 0 : index
    %c0_23 = arith.constant 0 : index
    %39 = vector.load %arg8[%c0_22, %c0_23] : memref<64x1xf32, #tpu.memory_space<vmem>>, vector<64x1xf32>
    tpu.vector_store %arg8[%c0_22, %c0_23], %38 {strides = array<i32>} : memref<64x1xf32, #tpu.memory_space<vmem>>, vector<64x1xf32>,
    %c0_i32_24 = arith.constant 0 : i32
    %40 = arith.cmpi eq, %arg1, %c0_i32_24 : i32
    %41 = arith.extui %40 : i1 to i32
    %c0_i32_25 = arith.constant 0 : i32
    %42 = arith.cmpi ne, %41, %c0_i32_25 : i32
    scf.if %42 {
      %cst_26 = arith.constant 1.000000e-30 : f32
      %43 = math.log %cst_26 : f32
      %c0_27 = arith.constant 0 : index
      %c0_28 = arith.constant 0 : index
      %44 = vector.load %arg8[%c0_27, %c0_28] : memref<64x1xf32, #tpu.memory_space<vmem>>, vector<64x1xf32>
      %c0_29 = arith.constant 0 : index
      %c0_30 = arith.constant 0 : index
      %45 = vector.load %arg6[%c0_29, %c0_30] : memref<64x1xf32, #tpu.memory_space<vmem>>, vector<64x1xf32>
      %46 = arith.subf %44, %45 : vector<64x1xf32>
      %c0_31 = arith.constant 0 : index
      %c0_32 = arith.constant 0 : index
      %47 = vector.load %arg7[%c0_31, %c0_32] : memref<64x1xf32, #tpu.memory_space<vmem>>, vector<64x1xf32>
      %48 = math.log %47 : vector<64x1xf32>
      %49 = arith.subf %46, %48 : vector<64x1xf32>
      %c-1_i32 = arith.constant -1 : i32
      %50 = vector.broadcast %c-1_i32 : i32 to vector<64x1xi32>
      %51 = arith.cmpi ne, %10, %50 : vector<64x1xi32>
      %52 = vector.broadcast %43 : f32 to vector<64x1xf32>
      %53 = arith.maximumf %49, %52 : vector<64x1xf32>
      %54 = vector.broadcast %43 : f32 to vector<64x1xf32>
      %55 = arith.select %51, %53, %54 : vector<64x1xi1>, vector<64x1xf32>
      %c0_33 = arith.constant 0 : index
      %c0_34 = arith.constant 0 : index
      %56 = vector.load %arg5[%c0_33, %c0_34] : memref<64x1xf32, #tpu.memory_space<vmem>>, vector<64x1xf32>
      tpu.vector_store %arg5[%c0_33, %c0_34], %55 {strides = array<i32>} : memref<64x1xf32, #tpu.memory_space<vmem>>, vector<64x1xf32>,
    } else {
    }
    return
  }
  func.func @transform_0(%arg0: i32, %arg1: i32) -> (i32, i32) {
    %c0_i32 = arith.constant 0 : i32
    %c0_i32_0 = arith.constant 0 : i32
    return %arg0, %c0_i32 : i32, i32
  }
  func.func @transform_1(%arg0: i32, %arg1: i32) -> (i32, i32) {
    %c0_i32 = arith.constant 0 : i32
    %c0_i32_0 = arith.constant 0 : i32
    return %c0_i32, %arg1 : i32, i32
  }
  func.func @transform_2(%arg0: i32, %arg1: i32) -> (i32, i32) {
    %c0_i32 = arith.constant 0 : i32
    %c0_i32_0 = arith.constant 0 : i32
    return %arg0, %c0_i32 : i32, i32
  }
  func.func @transform_3(%arg0: i32, %arg1: i32) -> (i32, i32) {
    %c0_i32 = arith.constant 0 : i32
    %c0_i32_0 = arith.constant 0 : i32
    return %arg0, %c0_i32 : i32, i32
  }
}

</mosaic_0001>

<llo_original>
// kernel: tpu_custom_call.1
$region0: #{tpu_custom_call.1}
  #allocation0 [shape = 'u32[]', space=smem, size = 0x4, offset = 0x4, fixed_abs, tag = 'smem constant byte address 0x4 - core index']
  #allocation1 [shape = 'u32[144,128]{1,0:T(1,128)}', space=vmem, size = 0x12000, scoped, tag = 'internal scratch']
  #allocation2 [shape = 'f32[64,1]{1,0:T(8,128)}', space=vmem, size = 0x8000, scoped, tag = 'scratch operand']
  #allocation3 [shape = 'f32[64,1]{1,0:T(8,128)}', space=vmem, size = 0x8000, scoped, tag = 'scratch operand']
  #allocation4 [shape = 'f32[64,1]{1,0:T(8,128)}', space=vmem, size = 0x8000, scoped, tag = 'scratch operand']
  %s0 = inlined_call_operand.vmem [shape: f32[64,128], index: 0, kind: input, shape index: {}]
  %s1 = inlined_call_operand.hbm [shape: f32[128,512], index: 1, kind: input, shape index: {}]
  %s2 = inlined_call_operand.vmem [shape: s32[64,1], index: 2, kind: input, shape index: {}]
  %s3 = inlined_call_operand.vmem [shape: f32[64,1], index: 3, kind: output, shape index: {}]
  %s4 = sld [smem:[#allocation0]]
  $region34: #{tpu_custom_call.1} parent=0
    _
  %s6 = ssub.s32 1, %s4
  %s7 = scalar_select 0, %s6, %s4
  $region1: #{tpu_custom_call.1} parent=0
    #allocation5 [shape = 'u8[262144]{0}', space=vmem, size = 0x40000, scoped, tag = 'input window, operand 1, single buffered']
    #allocation6 [shape = 's32[1]{0}', space=sflag, size = 0x4, scoped, tag = 'scoped memory for tpu_custom_call.1']
    %8 = vsyncpa [#allocation6], 0
    // Predicated region
    $region2: #{tpu_custom_call.1} parent=1 // pred_check
      _
    $region3: #{tpu_custom_call.1} parent=1 // pred_check_branch
      %10 = sbr.rel (0) target = $region5
    $region4: #{tpu_custom_call.1} parent=1 // pred_region
      _
    $region5: #{tpu_custom_call.1} parent=1 // pred_fallthru
      _
    // Predicated region
    $region6: #{tpu_custom_call.1} parent=1 // pred_check
      _
    $region7: #{tpu_custom_call.1} parent=1 // pred_check_branch
      %12 = sbr.rel (0) target = $region9
    $region8: #{tpu_custom_call.1} parent=1 // pred_region
      %s14 = ssub.s32 8192, 8192
      %15 = vsyncadd [#allocation6], %s14
      %s16 = sshll.u32 [#allocation5], 4
      %s17 = int_to_ptr.vmem [resolvable:$true] %s16
      %22 = dma.hbm_to_vmem [thread:$0]  %s1, 8192, %s17, [#allocation6], 512, 512, 32
    $region9: #{tpu_custom_call.1} parent=1 // pred_fallthru
      _
    // Predicated region
    $region10: #{tpu_custom_call.1} parent=1 // pred_check
      _
    $region11: #{tpu_custom_call.1} parent=1 // pred_check_branch
      %24 = sbr.rel (0) target = $region13
    $region12: #{tpu_custom_call.1} parent=1 // pred_region
      _
    $region13: #{tpu_custom_call.1} parent=1 // pred_fallthru
      _
    // Predicated region
    $region14: #{tpu_custom_call.1} parent=1 // pred_check
      _
    $region15: #{tpu_custom_call.1} parent=1 // pred_check_branch
      %26 = sbr.rel (0) target = $region17
    $region16: #{tpu_custom_call.1} parent=1 // pred_region
      %27 = dma.done [#allocation6], 8192
    $region17: #{tpu_custom_call.1} parent=1 // pred_fallthru
      _
    %p28 = scmp.eq.s32.totalorder 0, 0
    // Predicated region
    $region18: #{tpu_custom_call.1} parent=1 // pred_check
      %p29 = pneg %p28
    $region19: #{tpu_custom_call.1} parent=1 // pred_check_branch
      %31 = sbr.rel (%p29) target = $region21
    $region20: #{tpu_custom_call.1} parent=1 // pred_region
      %vm32 = vcmask 7168
      %33 = vst.msk [vmem:[#allocation2] sm:$0xff] %vm32, -inf
      %34 = vst.msk [vmem:[#allocation2 + $0x8] sm:$0xff] %vm32, -inf
      %35 = vst.msk [vmem:[#allocation2 + $0x10] sm:$0xff] %vm32, -inf
      %36 = vst.msk [vmem:[#allocation2 + $0x18] sm:$0xff] %vm32, -inf
      %37 = vst.msk [vmem:[#allocation2 + $0x20] sm:$0xff] %vm32, -inf
      %38 = vst.msk [vmem:[#allocation2 + $0x28] sm:$0xff] %vm32, -inf
      %39 = vst.msk [vmem:[#allocation2 + $0x30] sm:$0xff] %vm32, -inf
      %40 = vst.msk [vmem:[#allocation2 + $0x38] sm:$0xff] %vm32, -inf
      %41 = vst.msk [vmem:[#allocation3] sm:$0xff] %vm32, 0.0
      %42 = vst.msk [vmem:[#allocation3 + $0x8] sm:$0xff] %vm32, 0.0
      %43 = vst.msk [vmem:[#allocation3 + $0x10] sm:$0xff] %vm32, 0.0
      %44 = vst.msk [vmem:[#allocation3 + $0x18] sm:$0xff] %vm32, 0.0
      %45 = vst.msk [vmem:[#allocation3 + $0x20] sm:$0xff] %vm32, 0.0
      %46 = vst.msk [vmem:[#allocation3 + $0x28] sm:$0xff] %vm32, 0.0
      %47 = vst.msk [vmem:[#allocation3 + $0x30] sm:$0xff] %vm32, 0.0
      %48 = vst.msk [vmem:[#allocation3 + $0x38] sm:$0xff] %vm32, 0.0
      %49 = vst.msk [vmem:[#allocation4] sm:$0xff] %vm32, 0.0
      %50 = vst.msk [vmem:[#allocation4 + $0x8] sm:$0xff] %vm32, 0.0
      %51 = vst.msk [vmem:[#allocation4 + $0x10] sm:$0xff] %vm32, 0.0
      %52 = vst.msk [vmem:[#allocation4 + $0x18] sm:$0xff] %vm32, 0.0
      %53 = vst.msk [vmem:[#allocation4 + $0x20] sm:$0xff] %vm32, 0.0
      %54 = vst.msk [vmem:[#allocation4 + $0x28] sm:$0xff] %vm32, 0.0
      %55 = vst.msk [vmem:[#allocation4 + $0x30] sm:$0xff] %vm32, 0.0
      %56 = vst.msk [vmem:[#allocation4 + $0x38] sm:$0xff] %vm32, 0.0
    $region21: #{tpu_custom_call.1} parent=1 // pred_fallthru
      _
    %v57 = vld [vmem:[%s0] sm:$0xff]
    %v58 = vld [vmem:[%s0 + $0x8] sm:$0xff]
    %v59 = vld [vmem:[%s0 + $0x10] sm:$0xff]
    %v60 = vld [vmem:[%s0 + $0x18] sm:$0xff]
    %v61 = vld [vmem:[%s0 + $0x20] sm:$0xff]
    %v62 = vld [vmem:[%s0 + $0x28] sm:$0xff]
    %v63 = vld [vmem:[%s0 + $0x30] sm:$0xff]
    %v64 = vld [vmem:[%s0 + $0x38] sm:$0xff]
    %v65 = vld [vmem:[#allocation5] sm:$0xff]
    %v66 = vld [vmem:[#allocation5 + $0x8] sm:$0xff]
    %v67 = vld [vmem:[#allocation5 + $0x10] sm:$0xff]
    %v68 = vld [vmem:[#allocation5 + $0x18] sm:$0xff]
    %v69 = vld [vmem:[#allocation5 + $0x20] sm:$0xff]
    %v70 = vld [vmem:[#allocation5 + $0x28] sm:$0xff]
    %v71 = vld [vmem:[#allocation5 + $0x30] sm:$0xff]
    %v72 = vld [vmem:[#allocation5 + $0x38] sm:$0xff]
    %v73 = vld [vmem:[#allocation5 + $0x40] sm:$0xff]
    %v74 = vld [vmem:[#allocation5 + $0x48] sm:$0xff]
    %v75 = vld [vmem:[#allocation5 + $0x50] sm:$0xff]
    %v76 = vld [vmem:[#allocation5 + $0x58] sm:$0xff]
    %v77 = vld [vmem:[#allocation5 + $0x60] sm:$0xff]
    %v78 = vld [vmem:[#allocation5 + $0x68] sm:$0xff]
    %v79 = vld [vmem:[#allocation5 + $0x70] sm:$0xff]
    %v80 = vld [vmem:[#allocation5 + $0x78] sm:$0xff]
    %v81 = vld [vmem:[#allocation5 + $0x80] sm:$0xff]
    %v82 = vld [vmem:[#allocation5 + $0x88] sm:$0xff]
    %v83 = vld [vmem:[#allocation5 + $0x90] sm:$0xff]
    %v84 = vld [vmem:[#allocation5 + $0x98] sm:$0xff]
    %v85 = vld [vmem:[#allocation5 + $0xa0] sm:$0xff]
    %v86 = vld [vmem:[#allocation5 + $0xa8] sm:$0xff]
    %v87 = vld [vmem:[#allocation5 + $0xb0] sm:$0xff]
    %v88 = vld [vmem:[#allocation5 + $0xb8] sm:$0xff]
    %v89 = vld [vmem:[#allocation5 + $0xc0] sm:$0xff]
    %v90 = vld [vmem:[#allocation5 + $0xc8] sm:$0xff]
    %v91 = vld [vmem:[#allocation5 + $0xd0] sm:$0xff]
    %v92 = vld [vmem:[#allocation5 + $0xd8] sm:$0xff]
    %v93 = vld [vmem:[#allocation5 + $0xe0] sm:$0xff]
    %v94 = vld [vmem:[#allocation5 + $0xe8] sm:$0xff]
    %v95 = vld [vmem:[#allocation5 + $0xf0] sm:$0xff]
    %v96 = vld [vmem:[#allocation5 + $0xf8] sm:$0xff]
    %v97 = vld [vmem:[#allocation5 + $0x100] sm:$0xff]
    %v98 = vld [vmem:[#allocation5 + $0x108] sm:$0xff]
    %v99 = vld [vmem:[#allocation5 + $0x110] sm:$0xff]
    %v100 = vld [vmem:[#allocation5 + $0x118] sm:$0xff]
    %v101 = vld [vmem:[#allocation5 + $0x120] sm:$0xff]
    %v102 = vld [vmem:[#allocation5 + $0x128] sm:$0xff]
    %v103 = vld [vmem:[#allocation5 + $0x130] sm:$0xff]
    %v104 = vld [vmem:[#allocation5 + $0x138] sm:$0xff]
    %v105 = vld [vmem:[#allocation5 + $0x140] sm:$0xff]
    %v106 = vld [vmem:[#allocation5 + $0x148] sm:$0xff]
    %v107 = vld [vmem:[#allocation5 + $0x150] sm:$0xff]
    %v108 = vld [vmem:[#allocation5 + $0x158] sm:$0xff]
    %v109 = vld [vmem:[#allocation5 + $0x160] sm:$0xff]
    %v110 = vld [vmem:[#allocation5 + $0x168] sm:$0xff]
    %v111 = vld [vmem:[#allocation5 + $0x170] sm:$0xff]
    %v112 = vld [vmem:[#allocation5 + $0x178] sm:$0xff]
    %v113 = vld [vmem:[#allocation5 + $0x180] sm:$0xff]
    %v114 = vld [vmem:[#allocation5 + $0x188] sm:$0xff]
    %v115 = vld [vmem:[#allocation5 + $0x190] sm:$0xff]
    %v116 = vld [vmem:[#allocation5 + $0x198] sm:$0xff]
    %v117 = vld [vmem:[#allocation5 + $0x1a0] sm:$0xff]
    %v118 = vld [vmem:[#allocation5 + $0x1a8] sm:$0xff]
    %v119 = vld [vmem:[#allocation5 + $0x1b0] sm:$0xff]
    %v120 = vld [vmem:[#allocation5 + $0x1b8] sm:$0xff]
    %v121 = vld [vmem:[#allocation5 + $0x1c0] sm:$0xff]
    %v122 = vld [vmem:[#allocation5 + $0x1c8] sm:$0xff]
    %v123 = vld [vmem:[#allocation5 + $0x1d0] sm:$0xff]
    %v124 = vld [vmem:[#allocation5 + $0x1d8] sm:$0xff]
    %v125 = vld [vmem:[#allocation5 + $0x1e0] sm:$0xff]
    %v126 = vld [vmem:[#allocation5 + $0x1e8] sm:$0xff]
    %v127 = vld [vmem:[#allocation5 + $0x1f0] sm:$0xff]
    %v128 = vld [vmem:[#allocation5 + $0x1f8] sm:$0xff]
    %129 = vmatprep.subr.mxu0 %v126
    %130 = vmatpush1.msra.mxu0 %v125
    %131 = vmatprep.subr.mxu0 %v122
    %132 = vmatpush1.msra.mxu0 %v121
    %133 = vmatprep.subr.mxu0 %v118
    %134 = vmatpush1.msra.mxu0 %v117
    %135 = vmatprep.subr.mxu0 %v114
    %136 = vmatpush1.msra.mxu0 %v113
    %137 = vmatprep.subr.mxu0 %v110
    %138 = vmatpush1.msra.mxu0 %v109
    %139 = vmatprep.subr.mxu0 %v106
    %140 = vmatpush1.msra.mxu0 %v105
    %141 = vmatprep.subr.mxu0 %v102
    %142 = vmatpush1.msra.mxu0 %v101
    %143 = vmatprep.subr.mxu0 %v98
    %144 = vmatpush1.msra.mxu0 %v97
    %145 = vmatprep.subr.mxu0 %v94
    %146 = vmatpush1.msra.mxu0 %v93
    %147 = vmatprep.subr.mxu0 %v90
    %148 = vmatpush1.msra.mxu0 %v89
    %149 = vmatprep.subr.mxu0 %v86
    %150 = vmatpush1.msra.mxu0 %v85
    %151 = vmatprep.subr.mxu0 %v82
    %152 = vmatpush1.msra.mxu0 %v81
    %153 = vmatprep.subr.mxu0 %v78
    %154 = vmatpush1.msra.mxu0 %v77
    %155 = vmatprep.subr.mxu0 %v74
    %156 = vmatpush1.msra.mxu0 %v73
    %157 = vmatprep.subr.mxu0 %v70
    %158 = vmatpush1.msra.mxu0 %v69
    %159 = vmatprep.subr.mxu0 %v66
    %160 = vmatpush1.msra.mxu0 %v65
    %161 = vmatprep.subr.mxu0 0.0
    %162 = vmatpush2.msra.mxu0 0.0
    %163 = vmatprep.subr.mxu0 0.0
    %164 = vmatpush2.msra.mxu0 0.0
    %165 = vmatprep.subr.mxu0 0.0
    %166 = vmatpush2.msra.mxu0 0.0
    %167 = vmatprep.subr.mxu0 0.0
    %168 = vmatpush2.msra.mxu0 0.0
    %169 = vmatprep.subr.mxu0 0.0
    %170 = vmatpush2.msra.mxu0 0.0
    %171 = vmatprep.subr.mxu0 0.0
    %172 = vmatpush2.msra.mxu0 0.0
    %173 = vmatprep.subr.mxu0 0.0
    %174 = vmatpush2.msra.mxu0 0.0
    %175 = vmatprep.subr.mxu0 0.0
    %176 = vmatpush2.msra.mxu0 0.0
    %177 = vmatprep.subr.mxu0 0.0
    %178 = vmatpush2.msra.mxu0 0.0
    %179 = vmatprep.subr.mxu0 0.0
    %180 = vmatpush2.msra.mxu0 0.0
    %181 = vmatprep.subr.mxu0 0.0
    %182 = vmatpush2.msra.mxu0 0.0
    %183 = vmatprep.subr.mxu0 0.0
    %184 = vmatpush2.msra.mxu0 0.0
    %185 = vmatprep.subr.mxu0 0.0
    %186 = vmatpush2.msra.mxu0 0.0
    %187 = vmatprep.subr.mxu0 0.0
    %188 = vmatpush2.msra.mxu0 0.0
    %189 = vmatprep.subr.mxu0 0.0
    %190 = vmatpush2.msra.mxu0 0.0
    %191 = vmatprep.subr.mxu0 0.0
    %192 = vmatpush2.msra.mxu0 0.0
    %193 = vmatprep.mubr.f32.mxu0 0.0
    %194 = vmatmul.mubr.f32.gmra.mxu0 %v57
    %v195 = vpop.f32.mrf.mxu0
    %v196 = vadd.f32 0.0, %v195
    %v197 = vpop.f32.mrf.mxu0
    %v198 = vadd.f32 0.0, %v197
    %199 = vmatprep.mubr.f32.mxu0 0.0
    %200 = vmatmul.mubr.f32.gmra.mxu0 %v58
    %v201 = vpop.f32.mrf.mxu0
    %v202 = vadd.f32 0.0, %v201
    %v203 = vpop.f32.mrf.mxu0
    %v204 = vadd.f32 0.0, %v203
    %205 = vmatprep.mubr.f32.mxu0 0.0
    %206 = vmatmul.mubr.f32.gmra.mxu0 %v59
    %v207 = vpop.f32.mrf.mxu0
    %v208 = vadd.f32 0.0, %v207
    %v209 = vpop.f32.mrf.mxu0
    %v210 = vadd.f32 0.0, %v209
    %211 = vmatprep.mubr.f32.mxu0 0.0
    %212 = vmatmul.mubr.f32.gmra.mxu0 %v60
    %v213 = vpop.f32.mrf.mxu0
    %v214 = vadd.f32 0.0, %v213
    %v215 = vpop.f32.mrf.mxu0
    %v216 = vadd.f32 0.0, %v215
    %217 = vmatprep.mubr.f32.mxu0 0.0
    %218 = vmatmul.mubr.f32.gmra.mxu0 %v61
    %v219 = vpop.f32.mrf.mxu0
    %v220 = vadd.f32 0.0, %v219
    %v221 = vpop.f32.mrf.mxu0
    %v222 = vadd.f32 0.0, %v221
    %223 = vmatprep.mubr.f32.mxu0 0.0
    %224 = vmatmul.mubr.f32.gmra.mxu0 %v62
    %v225 = vpop.f32.mrf.mxu0
    %v226 = vadd.f32 0.0, %v225
    %v227 = vpop.f32.mrf.mxu0
    %v228 = vadd.f32 0.0, %v227
    %229 = vmatprep.mubr.f32.mxu0 0.0
    %230 = vmatmul.mubr.f32.gmra.mxu0 %v63
    %v231 = vpop.f32.mrf.mxu0
    %v232 = vadd.f32 0.0, %v231
    %v233 = vpop.f32.mrf.mxu0
    %v234 = vadd.f32 0.0, %v233
    %235 = vmatprep.mubr.f32.mxu0 0.0
    %236 = vmatmul.mubr.f32.gmra.mxu0 %v64
    %v237 = vpop.f32.mrf.mxu0
    %v238 = vadd.f32 0.0, %v237
    %v239 = vpop.f32.mrf.mxu0
    %v240 = vadd.f32 0.0, %v239
    %241 = vdwg.mxu0
    %242 = vmatprep.subr.mxu0 %v128
    %243 = vmatpush1.msra.mxu0 %v127
    %244 = vmatprep.subr.mxu0 %v124
    %245 = vmatpush1.msra.mxu0 %v123
    %246 = vmatprep.subr.mxu0 %v120
    %247 = vmatpush1.msra.mxu0 %v119
    %248 = vmatprep.subr.mxu0 %v116
    %249 = vmatpush1.msra.mxu0 %v115
    %250 = vmatprep.subr.mxu0 %v112
    %251 = vmatpush1.msra.mxu0 %v111
    %252 = vmatprep.subr.mxu0 %v108
    %253 = vmatpush1.msra.mxu0 %v107
    %254 = vmatprep.subr.mxu0 %v104
    %255 = vmatpush1.msra.mxu0 %v103
    %256 = vmatprep.subr.mxu0 %v100
    %257 = vmatpush1.msra.mxu0 %v99
    %258 = vmatprep.subr.mxu0 %v96
    %259 = vmatpush1.msra.mxu0 %v95
    %260 = vmatprep.subr.mxu0 %v92
    %261 = vmatpush1.msra.mxu0 %v91
    %262 = vmatprep.subr.mxu0 %v88
    %263 = vmatpush1.msra.mxu0 %v87
    %264 = vmatprep.subr.mxu0 %v84
    %265 = vmatpush1.msra.mxu0 %v83
    %266 = vmatprep.subr.mxu0 %v80
    %267 = vmatpush1.msra.mxu0 %v79
    %268 = vmatprep.subr.mxu0 %v76
    %269 = vmatpush1.msra.mxu0 %v75
    %270 = vmatprep.subr.mxu0 %v72
    %271 = vmatpush1.msra.mxu0 %v71
    %272 = vmatprep.subr.mxu0 %v68
    %273 = vmatpush1.msra.mxu0 %v67
    %274 = vmatprep.subr.mxu0 0.0
    %275 = vmatpush2.msra.mxu0 0.0
    %276 = vmatprep.subr.mxu0 0.0
    %277 = vmatpush2.msra.mxu0 0.0
    %278 = vmatprep.subr.mxu0 0.0
    %279 = vmatpush2.msra.mxu0 0.0
    %280 = vmatprep.subr.mxu0 0.0
    %281 = vmatpush2.msra.mxu0 0.0
    %282 = vmatprep.subr.mxu0 0.0
    %283 = vmatpush2.msra.mxu0 0.0
    %284 = vmatprep.subr.mxu0 0.0
    %285 = vmatpush2.msra.mxu0 0.0
    %286 = vmatprep.subr.mxu0 0.0
    %287 = vmatpush2.msra.mxu0 0.0
    %288 = vmatprep.subr.mxu0 0.0
    %289 = vmatpush2.msra.mxu0 0.0
    %290 = vmatprep.subr.mxu0 0.0
    %291 = vmatpush2.msra.mxu0 0.0
    %292 = vmatprep.subr.mxu0 0.0
    %293 = vmatpush2.msra.mxu0 0.0
    %294 = vmatprep.subr.mxu0 0.0
    %295 = vmatpush2.msra.mxu0 0.0
    %296 = vmatprep.subr.mxu0 0.0
    %297 = vmatpush2.msra.mxu0 0.0
    %298 = vmatprep.subr.mxu0 0.0
    %299 = vmatpush2.msra.mxu0 0.0
    %300 = vmatprep.subr.mxu0 0.0
    %301 = vmatpush2.msra.mxu0 0.0
    %302 = vmatprep.subr.mxu0 0.0
    %303 = vmatpush2.msra.mxu0 0.0
    %304 = vmatprep.subr.mxu0 0.0
    %305 = vmatpush2.msra.mxu0 0.0
    %306 = vmatprep.mubr.f32.mxu0 0.0
    %307 = vmatmul.mubr.f32.gmra.mxu0 %v57
    %v308 = vpop.f32.mrf.mxu0
    %v309 = vadd.f32 0.0, %v308
    %v310 = vpop.f32.mrf.mxu0
    %v311 = vadd.f32 0.0, %v310
    %312 = vmatprep.mubr.f32.mxu0 0.0
    %313 = vmatmul.mubr.f32.gmra.mxu0 %v58
    %v314 = vpop.f32.mrf.mxu0
    %v315 = vadd.f32 0.0, %v314
    %v316 = vpop.f32.mrf.mxu0
    %v317 = vadd.f32 0.0, %v316
    %318 = vmatprep.mubr.f32.mxu0 0.0
    %319 = vmatmul.mubr.f32.gmra.mxu0 %v59
    %v320 = vpop.f32.mrf.mxu0
    %v321 = vadd.f32 0.0, %v320
    %v322 = vpop.f32.mrf.mxu0
    %v323 = vadd.f32 0.0, %v322
    %324 = vmatprep.mubr.f32.mxu0 0.0
    %325 = vmatmul.mubr.f32.gmra.mxu0 %v60
    %v326 = vpop.f32.mrf.mxu0
    %v327 = vadd.f32 0.0, %v326
    %v328 = vpop.f32.mrf.mxu0
    %v329 = vadd.f32 0.0, %v328
    %330 = vmatprep.mubr.f32.mxu0 0.0
    %331 = vmatmul.mubr.f32.gmra.mxu0 %v61
    %v332 = vpop.f32.mrf.mxu0
    %v333 = vadd.f32 0.0, %v332
    %v334 = vpop.f32.mrf.mxu0
    %v335 = vadd.f32 0.0, %v334
    %336 = vmatprep.mubr.f32.mxu0 0.0
    %337 = vmatmul.mubr.f32.gmra.mxu0 %v62
    %v338 = vpop.f32.mrf.mxu0
    %v339 = vadd.f32 0.0, %v338
    %v340 = vpop.f32.mrf.mxu0
    %v341 = vadd.f32 0.0, %v340
    %342 = vmatprep.mubr.f32.mxu0 0.0
    %343 = vmatmul.mubr.f32.gmra.mxu0 %v63
    %v344 = vpop.f32.mrf.mxu0
    %v345 = vadd.f32 0.0, %v344
    %v346 = vpop.f32.mrf.mxu0
    %v347 = vadd.f32 0.0, %v346
    %348 = vmatprep.mubr.f32.mxu0 0.0
    %349 = vmatmul.mubr.f32.gmra.mxu0 %v64
    %v350 = vpop.f32.mrf.mxu0
    %v351 = vadd.f32 0.0, %v350
    %v352 = vpop.f32.mrf.mxu0
    %v353 = vadd.f32 0.0, %v352
    %354 = vdwg.mxu0
    %v355 = vmax.f32 %v196, -1.0
    %v356 = vmax.f32 %v198, -1.0
    %v357 = vmax.f32 %v309, -1.0
    %v358 = vmax.f32 %v311, -1.0
    %v359 = vmax.f32 %v202, -1.0
    %v360 = vmax.f32 %v204, -1.0
    %v361 = vmax.f32 %v315, -1.0
    %v362 = vmax.f32 %v317, -1.0
    %v363 = vmax.f32 %v208, -1.0
    %v364 = vmax.f32 %v210, -1.0
    %v365 = vmax.f32 %v321, -1.0
    %v366 = vmax.f32 %v323, -1.0
    %v367 = vmax.f32 %v214, -1.0
    %v368 = vmax.f32 %v216, -1.0
    %v369 = vmax.f32 %v327, -1.0
    %v370 = vmax.f32 %v329, -1.0
    %v371 = vmax.f32 %v220, -1.0
    %v372 = vmax.f32 %v222, -1.0
    %v373 = vmax.f32 %v333, -1.0
    %v374 = vmax.f32 %v335, -1.0
    %v375 = vmax.f32 %v226, -1.0
    %v376 = vmax.f32 %v228, -1.0
    %v377 = vmax.f32 %v339, -1.0
    %v378 = vmax.f32 %v341, -1.0
    %v379 = vmax.f32 %v232, -1.0
    %v380 = vmax.f32 %v234, -1.0
    %v381 = vmax.f32 %v345, -1.0
    %v382 = vmax.f32 %v347, -1.0
    %v383 = vmax.f32 %v238, -1.0
    %v384 = vmax.f32 %v240, -1.0
    %v385 = vmax.f32 %v351, -1.0
    %v386 = vmax.f32 %v353, -1.0
    %v387 = vmin.f32 %v355, 1.0
    %v388 = vmin.f32 %v356, 1.0
    %v389 = vmin.f32 %v357, 1.0
    %v390 = vmin.f32 %v358, 1.0
    %v391 = vmin.f32 %v359, 1.0
    %v392 = vmin.f32 %v360, 1.0
    %v393 = vmin.f32 %v361, 1.0
    %v394 = vmin.f32 %v362, 1.0
    %v395 = vmin.f32 %v363, 1.0
    %v396 = vmin.f32 %v364, 1.0
    %v397 = vmin.f32 %v365, 1.0
    %v398 = vmin.f32 %v366, 1.0
    %v399 = vmin.f32 %v367, 1.0
    %v400 = vmin.f32 %v368, 1.0
    %v401 = vmin.f32 %v369, 1.0
    %v402 = vmin.f32 %v370, 1.0
    %v403 = vmin.f32 %v371, 1.0
    %v404 = vmin.f32 %v372, 1.0
    %v405 = vmin.f32 %v373, 1.0
    %v406 = vmin.f32 %v374, 1.0
    %v407 = vmin.f32 %v375, 1.0
    %v408 = vmin.f32 %v376, 1.0
    %v409 = vmin.f32 %v377, 1.0
    %v410 = vmin.f32 %v378, 1.0
    %v411 = vmin.f32 %v379, 1.0
    %v412 = vmin.f32 %v380, 1.0
    %v413 = vmin.f32 %v381, 1.0
    %v414 = vmin.f32 %v382, 1.0
    %v415 = vmin.f32 %v383, 1.0
    %v416 = vmin.f32 %v384, 1.0
    %v417 = vmin.f32 %v385, 1.0
    %v418 = vmin.f32 %v386, 1.0
    %v419 = vld [vmem:[%s2] sm:$0xff]
    %v420 = vld [vmem:[%s2 + $0x8] sm:$0xff]
    %v421 = vld [vmem:[%s2 + $0x10] sm:$0xff]
    %v422 = vld [vmem:[%s2 + $0x18] sm:$0xff]
    %v423 = vld [vmem:[%s2 + $0x20] sm:$0xff]
    %v424 = vld [vmem:[%s2 + $0x28] sm:$0xff]
    %v425 = vld [vmem:[%s2 + $0x30] sm:$0xff]
    %v426 = vld [vmem:[%s2 + $0x38] sm:$0xff]
    %v427 = vld [vmem:[#allocation2] sm:$0xff]
    %v428 = vld [vmem:[#allocation2 + $0x8] sm:$0xff]
    %v429 = vld [vmem:[#allocation2 + $0x10] sm:$0xff]
    %v430 = vld [vmem:[#allocation2 + $0x18] sm:$0xff]
    %v431 = vld [vmem:[#allocation2 + $0x20] sm:$0xff]
    %v432 = vld [vmem:[#allocation2 + $0x28] sm:$0xff]
    %v433 = vld [vmem:[#allocation2 + $0x30] sm:$0xff]
    %v434 = vld [vmem:[#allocation2 + $0x38] sm:$0xff]
    %v435 = vmax.f32 %v387, %v388
    %v436 = vmax.f32 %v435, %v389
    %v437 = vmax.f32 %v436, %v390
    %438 = vmax.xlane.f32.xlu0 %v437
    %v439 = vpop.xlane.xlu0 %438
    %v440 = vmax.f32 %v391, %v392
    %v441 = vmax.f32 %v440, %v393
    %v442 = vmax.f32 %v441, %v394
    %443 = vmax.xlane.f32.xlu0 %v442
    %v444 = vpop.xlane.xlu0 %443
    %v445 = vmax.f32 %v395, %v396
    %v446 = vmax.f32 %v445, %v397
    %v447 = vmax.f32 %v446, %v398
    %448 = vmax.xlane.f32.xlu0 %v447
    %v449 = vpop.xlane.xlu0 %448
    %v450 = vmax.f32 %v399, %v400
    %v451 = vmax.f32 %v450, %v401
    %v452 = vmax.f32 %v451, %v402
    %453 = vmax.xlane.f32.xlu0 %v452
    %v454 = vpop.xlane.xlu0 %453
    %v455 = vmax.f32 %v403, %v404
    %v456 = vmax.f32 %v455, %v405
    %v457 = vmax.f32 %v456, %v406
    %458 = vmax.xlane.f32.xlu0 %v457
    %v459 = vpop.xlane.xlu0 %458
    %v460 = vmax.f32 %v407, %v408
    %v461 = vmax.f32 %v460, %v409
    %v462 = vmax.f32 %v461, %v410
    %463 = vmax.xlane.f32.xlu0 %v462
    %v464 = vpop.xlane.xlu0 %463
    %v465 = vmax.f32 %v411, %v412
    %v466 = vmax.f32 %v465, %v413
    %v467 = vmax.f32 %v466, %v414
    %468 = vmax.xlane.f32.xlu0 %v467
    %v469 = vpop.xlane.xlu0 %468
    %v470 = vmax.f32 %v415, %v416
    %v471 = vmax.f32 %v470, %v417
    %v472 = vmax.f32 %v471, %v418
    %473 = vmax.xlane.f32.xlu0 %v472
    %v474 = vpop.xlane.xlu0 %473
    %v475 = vmax.f32 %v427, %v439
    %v476 = vmax.f32 %v428, %v444
    %v477 = vmax.f32 %v429, %v449
    %v478 = vmax.f32 %v430, %v454
    %v479 = vmax.f32 %v431, %v459
    %v480 = vmax.f32 %v432, %v464
    %v481 = vmax.f32 %v433, %v469
    %v482 = vmax.f32 %v434, %v474
    %v483 = vld [vmem:[#allocation3] sm:$0xff]
    %v484 = vld [vmem:[#allocation3 + $0x8] sm:$0xff]
    %v485 = vld [vmem:[#allocation3 + $0x10] sm:$0xff]
    %v486 = vld [vmem:[#allocation3 + $0x18] sm:$0xff]
    %v487 = vld [vmem:[#allocation3 + $0x20] sm:$0xff]
    %v488 = vld [vmem:[#allocation3 + $0x28] sm:$0xff]
    %v489 = vld [vmem:[#allocation3 + $0x30] sm:$0xff]
    %v490 = vld [vmem:[#allocation3 + $0x38] sm:$0xff]
    %v491 = vsub.f32 %v427, %v475
    %v492 = vsub.f32 %v428, %v476
    %v493 = vsub.f32 %v429, %v477
    %v494 = vsub.f32 %v430, %v478
    %v495 = vsub.f32 %v431, %v479
    %v496 = vsub.f32 %v432, %v480
    %v497 = vsub.f32 %v433, %v481
    %v498 = vsub.f32 %v434, %v482
    %v499 = vmul.f32 %v491, 1.442695
    %v500 = vpow.pop %v499
    %v501 = vmul.f32 %v492, 1.442695
    %v502 = vpow.pop %v501
    %v503 = vmul.f32 %v493, 1.442695
    %v504 = vpow.pop %v503
    %v505 = vmul.f32 %v494, 1.442695
    %v506 = vpow.pop %v505
    %v507 = vmul.f32 %v495, 1.442695
    %v508 = vpow.pop %v507
    %v509 = vmul.f32 %v496, 1.442695
    %v510 = vpow.pop %v509
    %v511 = vmul.f32 %v497, 1.442695
    %v512 = vpow.pop %v511
    %v513 = vmul.f32 %v498, 1.442695
    %v514 = vpow.pop %v513
    %v515 = vmul.f32 %v483, %v500
    %v516 = vmul.f32 %v484, %v502
    %v517 = vmul.f32 %v485, %v504
    %v518 = vmul.f32 %v486, %v506
    %v519 = vmul.f32 %v487, %v508
    %v520 = vmul.f32 %v488, %v510
    %v521 = vmul.f32 %v489, %v512
    %v522 = vmul.f32 %v490, %v514
    %524 = vset.pattern.permute.xlu0 0
    %525 = vperm.xlu0 %524, %v475
    %v526 = vpop.permute.xlu0 %525
    %529 = vset.pattern.permute.xlu0 0
    %530 = vperm.xlu0 %529, %v476
    %v531 = vpop.permute.xlu0 %530
    %534 = vset.pattern.permute.xlu0 0
    %535 = vperm.xlu0 %534, %v477
    %v536 = vpop.permute.xlu0 %535
    %539 = vset.pattern.permute.xlu0 0
    %540 = vperm.xlu0 %539, %v478
    %v541 = vpop.permute.xlu0 %540
    %544 = vset.pattern.permute.xlu0 0
    %545 = vperm.xlu0 %544, %v479
    %v546 = vpop.permute.xlu0 %545
    %549 = vset.pattern.permute.xlu0 0
    %550 = vperm.xlu0 %549, %v480
    %v551 = vpop.permute.xlu0 %550
    %554 = vset.pattern.permute.xlu0 0
    %555 = vperm.xlu0 %554, %v481
    %v556 = vpop.permute.xlu0 %555
    %559 = vset.pattern.permute.xlu0 0
    %560 = vperm.xlu0 %559, %v482
    %v561 = vpop.permute.xlu0 %560
    %v563 = vsub.f32 %v387, %v526
    %v564 = vsub.f32 %v388, %v526
    %v565 = vsub.f32 %v389, %v526
    %v566 = vsub.f32 %v390, %v526
    %v567 = vsub.f32 %v391, %v531
    %v568 = vsub.f32 %v392, %v531
    %v569 = vsub.f32 %v393, %v531
    %v570 = vsub.f32 %v394, %v531
    %v571 = vsub.f32 %v395, %v536
    %v572 = vsub.f32 %v396, %v536
    %v573 = vsub.f32 %v397, %v536
    %v574 = vsub.f32 %v398, %v536
    %v575 = vsub.f32 %v399, %v541
    %v576 = vsub.f32 %v400, %v541
    %v577 = vsub.f32 %v401, %v541
    %v578 = vsub.f32 %v402, %v541
    %v579 = vsub.f32 %v403, %v546
    %v580 = vsub.f32 %v404, %v546
    %v581 = vsub.f32 %v405, %v546
    %v582 = vsub.f32 %v406, %v546
    %v583 = vsub.f32 %v407, %v551
    %v584 = vsub.f32 %v408, %v551
    %v585 = vsub.f32 %v409, %v551
    %v586 = vsub.f32 %v410, %v551
    %v587 = vsub.f32 %v411, %v556
    %v588 = vsub.f32 %v412, %v556
    %v589 = vsub.f32 %v413, %v556
    %v590 = vsub.f32 %v414, %v556
    %v591 = vsub.f32 %v415, %v561
    %v592 = vsub.f32 %v416, %v561
    %v593 = vsub.f32 %v417, %v561
    %v594 = vsub.f32 %v418, %v561
    %v595 = vmul.f32 %v563, 1.442695
    %v596 = vpow.pop %v595
    %v597 = vmul.f32 %v564, 1.442695
    %v598 = vpow.pop %v597
    %v599 = vmul.f32 %v565, 1.442695
    %v600 = vpow.pop %v599
    %v601 = vmul.f32 %v566, 1.442695
    %v602 = vpow.pop %v601
    %v603 = vmul.f32 %v567, 1.442695
    %v604 = vpow.pop %v603
    %v605 = vmul.f32 %v568, 1.442695
    %v606 = vpow.pop %v605
    %v607 = vmul.f32 %v569, 1.442695
    %v608 = vpow.pop %v607
    %v609 = vmul.f32 %v570, 1.442695
    %v610 = vpow.pop %v609
    %v611 = vmul.f32 %v571, 1.442695
    %v612 = vpow.pop %v611
    %v613 = vmul.f32 %v572, 1.442695
    %v614 = vpow.pop %v613
    %v615 = vmul.f32 %v573, 1.442695
    %v616 = vpow.pop %v615
    %v617 = vmul.f32 %v574, 1.442695
    %v618 = vpow.pop %v617
    %v619 = vmul.f32 %v575, 1.442695
    %v620 = vpow.pop %v619
    %v621 = vmul.f32 %v576, 1.442695
    %v622 = vpow.pop %v621
    %v623 = vmul.f32 %v577, 1.442695
    %v624 = vpow.pop %v623
    %v625 = vmul.f32 %v578, 1.442695
    %v626 = vpow.pop %v625
    %v627 = vmul.f32 %v579, 1.442695
    %v628 = vpow.pop %v627
    %v629 = vmul.f32 %v580, 1.442695
    %v630 = vpow.pop %v629
    %v631 = vmul.f32 %v581, 1.442695
    %v632 = vpow.pop %v631
    %v633 = vmul.f32 %v582, 1.442695
    %v634 = vpow.pop %v633
    %v635 = vmul.f32 %v583, 1.442695
    %v636 = vpow.pop %v635
    %v637 = vmul.f32 %v584, 1.442695
    %v638 = vpow.pop %v637
    %v639 = vmul.f32 %v585, 1.442695
    %v640 = vpow.pop %v639
    %v641 = vmul.f32 %v586, 1.442695
    %v642 = vpow.pop %v641
    %v643 = vmul.f32 %v587, 1.442695
    %v644 = vpow.pop %v643
    %v645 = vmul.f32 %v588, 1.442695
    %v646 = vpow.pop %v645
    %v647 = vmul.f32 %v589, 1.442695
    %v648 = vpow.pop %v647
    %v649 = vmul.f32 %v590, 1.442695
    %v650 = vpow.pop %v649
    %v651 = vmul.f32 %v591, 1.442695
    %v652 = vpow.pop %v651
    %v653 = vmul.f32 %v592, 1.442695
    %v654 = vpow.pop %v653
    %v655 = vmul.f32 %v593, 1.442695
    %v656 = vpow.pop %v655
    %v657 = vmul.f32 %v594, 1.442695
    %v658 = vpow.pop %v657
    %v659 = vadd.f32 %v596, %v598
    %v660 = vadd.f32 %v659, %v600
    %v661 = vadd.f32 %v660, %v602
    %662 = vadd.xlane.f32.xlu0 %v661
    %v663 = vpop.xlane.xlu0 %662
    %v664 = vadd.f32 %v604, %v606
    %v665 = vadd.f32 %v664, %v608
    %v666 = vadd.f32 %v665, %v610
    %667 = vadd.xlane.f32.xlu0 %v666
    %v668 = vpop.xlane.xlu0 %667
    %v669 = vadd.f32 %v612, %v614
    %v670 = vadd.f32 %v669, %v616
    %v671 = vadd.f32 %v670, %v618
    %672 = vadd.xlane.f32.xlu0 %v671
    %v673 = vpop.xlane.xlu0 %672
    %v674 = vadd.f32 %v620, %v622
    %v675 = vadd.f32 %v674, %v624
    %v676 = vadd.f32 %v675, %v626
    %677 = vadd.xlane.f32.xlu0 %v676
    %v678 = vpop.xlane.xlu0 %677
    %v679 = vadd.f32 %v628, %v630
    %v680 = vadd.f32 %v679, %v632
    %v681 = vadd.f32 %v680, %v634
    %682 = vadd.xlane.f32.xlu0 %v681
    %v683 = vpop.xlane.xlu0 %682
    %v684 = vadd.f32 %v636, %v638
    %v685 = vadd.f32 %v684, %v640
    %v686 = vadd.f32 %v685, %v642
    %687 = vadd.xlane.f32.xlu0 %v686
    %v688 = vpop.xlane.xlu0 %687
    %v689 = vadd.f32 %v644, %v646
    %v690 = vadd.f32 %v689, %v648
    %v691 = vadd.f32 %v690, %v650
    %692 = vadd.xlane.f32.xlu0 %v691
    %v693 = vpop.xlane.xlu0 %692
    %v694 = vadd.f32 %v652, %v654
    %v695 = vadd.f32 %v694, %v656
    %v696 = vadd.f32 %v695, %v658
    %697 = vadd.xlane.f32.xlu0 %v696
    %v698 = vpop.xlane.xlu0 %697
    %v699 = vadd.f32 %v515, %v663
    %v700 = vadd.f32 %v516, %v668
    %v701 = vadd.f32 %v517, %v673
    %v702 = vadd.f32 %v518, %v678
    %v703 = vadd.f32 %v519, %v683
    %v704 = vadd.f32 %v520, %v688
    %v705 = vadd.f32 %v521, %v693
    %v706 = vadd.f32 %v522, %v698
    %vm707 = vcmask 7168
    %708 = vst.msk [vmem:[#allocation3] sm:$0xff] %vm707, %v699
    %709 = vst.msk [vmem:[#allocation3 + $0x8] sm:$0xff] %vm707, %v700
    %710 = vst.msk [vmem:[#allocation3 + $0x10] sm:$0xff] %vm707, %v701
    %711 = vst.msk [vmem:[#allocation3 + $0x18] sm:$0xff] %vm707, %v702
    %712 = vst.msk [vmem:[#allocation3 + $0x20] sm:$0xff] %vm707, %v703
    %713 = vst.msk [vmem:[#allocation3 + $0x28] sm:$0xff] %vm707, %v704
    %714 = vst.msk [vmem:[#allocation3 + $0x30] sm:$0xff] %vm707, %v705
    %715 = vst.msk [vmem:[#allocation3 + $0x38] sm:$0xff] %vm707, %v706
    %716 = vst.msk [vmem:[#allocation2] sm:$0xff] %vm707, %v475
    %717 = vst.msk [vmem:[#allocation2 + $0x8] sm:$0xff] %vm707, %v476
    %718 = vst.msk [vmem:[#allocation2 + $0x10] sm:$0xff] %vm707, %v477
    %719 = vst.msk [vmem:[#allocation2 + $0x18] sm:$0xff] %vm707, %v478
    %720 = vst.msk [vmem:[#allocation2 + $0x20] sm:$0xff] %vm707, %v479
    %721 = vst.msk [vmem:[#allocation2 + $0x28] sm:$0xff] %vm707, %v480
    %722 = vst.msk [vmem:[#allocation2 + $0x30] sm:$0xff] %vm707, %v481
    %723 = vst.msk [vmem:[#allocation2 + $0x38] sm:$0xff] %vm707, %v482
    %v724 = vlaneseq
    %v725 = vand.u32 %v724, 127
    %v726 = vadd.s32 %v725, 128
    %v727 = vadd.s32 %v725, 256
    %v728 = vadd.s32 %v725, 384
    %s729 = smul.u32 0, 512
    %v730 = vstv %s729
    %v731 = vadd.s32 %v725, %v730
    %v732 = vadd.s32 %v726, %v730
    %v733 = vadd.s32 %v727, %v730
    %v734 = vadd.s32 %v728, %v730
    %v735 = vld [vmem:[#allocation4] sm:$0xff]
    %v736 = vld [vmem:[#allocation4 + $0x8] sm:$0xff]
    %v737 = vld [vmem:[#allocation4 + $0x10] sm:$0xff]
    %v738 = vld [vmem:[#allocation4 + $0x18] sm:$0xff]
    %v739 = vld [vmem:[#allocation4 + $0x20] sm:$0xff]
    %v740 = vld [vmem:[#allocation4 + $0x28] sm:$0xff]
    %v741 = vld [vmem:[#allocation4 + $0x30] sm:$0xff]
    %v742 = vld [vmem:[#allocation4 + $0x38] sm:$0xff]
    %743 = vset.pattern.permute.xlu0 0
    %744 = vperm.xlu0 %743, %v419
    %v745 = vpop.permute.xlu0 %744
    %746 = vset.pattern.permute.xlu0 0
    %747 = vperm.xlu0 %746, %v420
    %v748 = vpop.permute.xlu0 %747
    %749 = vset.pattern.permute.xlu0 0
    %750 = vperm.xlu0 %749, %v421
    %v751 = vpop.permute.xlu0 %750
    %752 = vset.pattern.permute.xlu0 0
    %753 = vperm.xlu0 %752, %v422
    %v754 = vpop.permute.xlu0 %753
    %755 = vset.pattern.permute.xlu0 0
    %756 = vperm.xlu0 %755, %v423
    %v757 = vpop.permute.xlu0 %756
    %758 = vset.pattern.permute.xlu0 0
    %759 = vperm.xlu0 %758, %v424
    %v760 = vpop.permute.xlu0 %759
    %761 = vset.pattern.permute.xlu0 0
    %762 = vperm.xlu0 %761, %v425
    %v763 = vpop.permute.xlu0 %762
    %764 = vset.pattern.permute.xlu0 0
    %765 = vperm.xlu0 %764, %v426
    %v766 = vpop.permute.xlu0 %765
    %vm767 = vcmp.eq.s32.totalorder %v731, %v745
    %vm768 = vcmp.eq.s32.totalorder %v732, %v745
    %vm769 = vcmp.eq.s32.totalorder %v733, %v745
    %vm770 = vcmp.eq.s32.totalorder %v734, %v745
    %vm771 = vcmp.eq.s32.totalorder %v731, %v748
    %vm772 = vcmp.eq.s32.totalorder %v732, %v748
    %vm773 = vcmp.eq.s32.totalorder %v733, %v748
    %vm774 = vcmp.eq.s32.totalorder %v734, %v748
    %vm775 = vcmp.eq.s32.totalorder %v731, %v751
    %vm776 = vcmp.eq.s32.totalorder %v732, %v751
    %vm777 = vcmp.eq.s32.totalorder %v733, %v751
    %vm778 = vcmp.eq.s32.totalorder %v734, %v751
    %vm779 = vcmp.eq.s32.totalorder %v731, %v754
    %vm780 = vcmp.eq.s32.totalorder %v732, %v754
    %vm781 = vcmp.eq.s32.totalorder %v733, %v754
    %vm782 = vcmp.eq.s32.totalorder %v734, %v754
    %vm783 = vcmp.eq.s32.totalorder %v731, %v757
    %vm784 = vcmp.eq.s32.totalorder %v732, %v757
    %vm785 = vcmp.eq.s32.totalorder %v733, %v757
    %vm786 = vcmp.eq.s32.totalorder %v734, %v757
    %vm787 = vcmp.eq.s32.totalorder %v731, %v760
    %vm788 = vcmp.eq.s32.totalorder %v732, %v760
    %vm789 = vcmp.eq.s32.totalorder %v733, %v760
    %vm790 = vcmp.eq.s32.totalorder %v734, %v760
    %vm791 = vcmp.eq.s32.totalorder %v731, %v763
    %vm792 = vcmp.eq.s32.totalorder %v732, %v763
    %vm793 = vcmp.eq.s32.totalorder %v733, %v763
    %vm794 = vcmp.eq.s32.totalorder %v734, %v763
    %vm795 = vcmp.eq.s32.totalorder %v731, %v766
    %vm796 = vcmp.eq.s32.totalorder %v732, %v766
    %vm797 = vcmp.eq.s32.totalorder %v733, %v766
    %vm798 = vcmp.eq.s32.totalorder %v734, %v766
    %v799 = vsel %vm767, %v387, 0.0
    %v800 = vsel %vm768, %v388, 0.0
    %v801 = vsel %vm769, %v389, 0.0
    %v802 = vsel %vm770, %v390, 0.0
    %v803 = vsel %vm771, %v391, 0.0
    %v804 = vsel %vm772, %v392, 0.0
    %v805 = vsel %vm773, %v393, 0.0
    %v806 = vsel %vm774, %v394, 0.0
    %v807 = vsel %vm775, %v395, 0.0
    %v808 = vsel %vm776, %v396, 0.0
    %v809 = vsel %vm777, %v397, 0.0
    %v810 = vsel %vm778, %v398, 0.0
    %v811 = vsel %vm779, %v399, 0.0
    %v812 = vsel %vm780, %v400, 0.0
    %v813 = vsel %vm781, %v401, 0.0
    %v814 = vsel %vm782, %v402, 0.0
    %v815 = vsel %vm783, %v403, 0.0
    %v816 = vsel %vm784, %v404, 0.0
    %v817 = vsel %vm785, %v405, 0.0
    %v818 = vsel %vm786, %v406, 0.0
    %v819 = vsel %vm787, %v407, 0.0
    %v820 = vsel %vm788, %v408, 0.0
    %v821 = vsel %vm789, %v409, 0.0
    %v822 = vsel %vm790, %v410, 0.0
    %v823 = vsel %vm791, %v411, 0.0
    %v824 = vsel %vm792, %v412, 0.0
    %v825 = vsel %vm793, %v413, 0.0
    %v826 = vsel %vm794, %v414, 0.0
    %v827 = vsel %vm795, %v415, 0.0
    %v828 = vsel %vm796, %v416, 0.0
    %v829 = vsel %vm797, %v417, 0.0
    %v830 = vsel %vm798, %v418, 0.0
    %v831 = vadd.f32 %v799, %v800
    %v832 = vadd.f32 %v831, %v801
    %v833 = vadd.f32 %v832, %v802
    %834 = vadd.xlane.f32.xlu0 %v833
    %v835 = vpop.xlane.xlu0 %834
    %v836 = vadd.f32 %v803, %v804
    %v837 = vadd.f32 %v836, %v805
    %v838 = vadd.f32 %v837, %v806
    %839 = vadd.xlane.f32.xlu0 %v838
    %v840 = vpop.xlane.xlu0 %839
    %v841 = vadd.f32 %v807, %v808
    %v842 = vadd.f32 %v841, %v809
    %v843 = vadd.f32 %v842, %v810
    %844 = vadd.xlane.f32.xlu0 %v843
    %v845 = vpop.xlane.xlu0 %844
    %v846 = vadd.f32 %v811, %v812
    %v847 = vadd.f32 %v846, %v813
    %v848 = vadd.f32 %v847, %v814
    %849 = vadd.xlane.f32.xlu0 %v848
    %v850 = vpop.xlane.xlu0 %849
    %v851 = vadd.f32 %v815, %v816
    %v852 = vadd.f32 %v851, %v817
    %v853 = vadd.f32 %v852, %v818
    %854 = vadd.xlane.f32.xlu0 %v853
    %v855 = vpop.xlane.xlu0 %854
    %v856 = vadd.f32 %v819, %v820
    %v857 = vadd.f32 %v856, %v821
    %v858 = vadd.f32 %v857, %v822
    %859 = vadd.xlane.f32.xlu0 %v858
    %v860 = vpop.xlane.xlu0 %859
    %v861 = vadd.f32 %v823, %v824
    %v862 = vadd.f32 %v861, %v825
    %v863 = vadd.f32 %v862, %v826
    %864 = vadd.xlane.f32.xlu0 %v863
    %v865 = vpop.xlane.xlu0 %864
    %v866 = vadd.f32 %v827, %v828
    %v867 = vadd.f32 %v866, %v829
    %v868 = vadd.f32 %v867, %v830
    %869 = vadd.xlane.f32.xlu0 %v868
    %v870 = vpop.xlane.xlu0 %869
    %v871 = vadd.f32 %v735, %v835
    %v872 = vadd.f32 %v736, %v840
    %v873 = vadd.f32 %v737, %v845
    %v874 = vadd.f32 %v738, %v850
    %v875 = vadd.f32 %v739, %v855
    %v876 = vadd.f32 %v740, %v860
    %v877 = vadd.f32 %v741, %v865
    %v878 = vadd.f32 %v742, %v870
    %879 = vst.msk [vmem:[#allocation4] sm:$0xff] %vm707, %v871
    %880 = vst.msk [vmem:[#allocation4 + $0x8] sm:$0xff] %vm707, %v872
    %881 = vst.msk [vmem:[#allocation4 + $0x10] sm:$0xff] %vm707, %v873
    %882 = vst.msk [vmem:[#allocation4 + $0x18] sm:$0xff] %vm707, %v874
    %883 = vst.msk [vmem:[#allocation4 + $0x20] sm:$0xff] %vm707, %v875
    %884 = vst.msk [vmem:[#allocation4 + $0x28] sm:$0xff] %vm707, %v876
    %885 = vst.msk [vmem:[#allocation4 + $0x30] sm:$0xff] %vm707, %v877
    %886 = vst.msk [vmem:[#allocation4 + $0x38] sm:$0xff] %vm707, %v878
    // Predicated region
    $region22: #{tpu_custom_call.1} parent=1 // pred_check
      %p887 = pneg %p28
    $region23: #{tpu_custom_call.1} parent=1 // pred_check_branch
      %889 = sbr.rel (%p887) target = $region25
    $region24: #{tpu_custom_call.1} parent=1 // pred_region
      %v890 = vld [vmem:[#allocation4] sm:$0xff]
      %v891 = vld [vmem:[#allocation4 + $0x8] sm:$0xff]
      %v892 = vld [vmem:[#allocation4 + $0x10] sm:$0xff]
      %v893 = vld [vmem:[#allocation4 + $0x18] sm:$0xff]
      %v894 = vld [vmem:[#allocation4 + $0x20] sm:$0xff]
      %v895 = vld [vmem:[#allocation4 + $0x28] sm:$0xff]
      %v896 = vld [vmem:[#allocation4 + $0x30] sm:$0xff]
      %v897 = vld [vmem:[#allocation4 + $0x38] sm:$0xff]
      %v898 = vld [vmem:[#allocation2] sm:$0xff]
      %v899 = vld [vmem:[#allocation2 + $0x8] sm:$0xff]
      %v900 = vld [vmem:[#allocation2 + $0x10] sm:$0xff]
      %v901 = vld [vmem:[#allocation2 + $0x18] sm:$0xff]
      %v902 = vld [vmem:[#allocation2 + $0x20] sm:$0xff]
      %v903 = vld [vmem:[#allocation2 + $0x28] sm:$0xff]
      %v904 = vld [vmem:[#allocation2 + $0x30] sm:$0xff]
      %v905 = vld [vmem:[#allocation2 + $0x38] sm:$0xff]
      %v906 = vsub.f32 %v890, %v898
      %v907 = vsub.f32 %v891, %v899
      %v908 = vsub.f32 %v892, %v900
      %v909 = vsub.f32 %v893, %v901
      %v910 = vsub.f32 %v894, %v902
      %v911 = vsub.f32 %v895, %v903
      %v912 = vsub.f32 %v896, %v904
      %v913 = vsub.f32 %v897, %v905
      %v914 = vld [vmem:[#allocation3] sm:$0xff]
      %v915 = vld [vmem:[#allocation3 + $0x8] sm:$0xff]
      %v916 = vld [vmem:[#allocation3 + $0x10] sm:$0xff]
      %v917 = vld [vmem:[#allocation3 + $0x18] sm:$0xff]
      %v918 = vld [vmem:[#allocation3 + $0x20] sm:$0xff]
      %v919 = vld [vmem:[#allocation3 + $0x28] sm:$0xff]
      %v920 = vld [vmem:[#allocation3 + $0x30] sm:$0xff]
      %v921 = vld [vmem:[#allocation3 + $0x38] sm:$0xff]
      %v922 = vlog2.pop %v914
      %v923 = vmul.f32 %v922, 0.6931472
      %v924 = vlog2.pop %v915
      %v925 = vmul.f32 %v924, 0.6931472
      %v926 = vlog2.pop %v916
      %v927 = vmul.f32 %v926, 0.6931472
      %v928 = vlog2.pop %v917
      %v929 = vmul.f32 %v928, 0.6931472
      %v930 = vlog2.pop %v918
      %v931 = vmul.f32 %v930, 0.6931472
      %v932 = vlog2.pop %v919
      %v933 = vmul.f32 %v932, 0.6931472
      %v934 = vlog2.pop %v920
      %v935 = vmul.f32 %v934, 0.6931472
      %v936 = vlog2.pop %v921
      %v937 = vmul.f32 %v936, 0.6931472
      %v938 = vsub.f32 %v906, %v923
      %v939 = vsub.f32 %v907, %v925
      %v940 = vsub.f32 %v908, %v927
      %v941 = vsub.f32 %v909, %v929
      %v942 = vsub.f32 %v910, %v931
      %v943 = vsub.f32 %v911, %v933
      %v944 = vsub.f32 %v912, %v935
      %v945 = vsub.f32 %v913, %v937
      %vm946 = vcmp.ne.s32.totalorder %v419, 4294967295
      %vm947 = vcmp.ne.s32.totalorder %v420, 4294967295
      %vm948 = vcmp.ne.s32.totalorder %v421, 4294967295
      %vm949 = vcmp.ne.s32.totalorder %v422, 4294967295
      %vm950 = vcmp.ne.s32.totalorder %v423, 4294967295
      %vm951 = vcmp.ne.s32.totalorder %v424, 4294967295
      %vm952 = vcmp.ne.s32.totalorder %v425, 4294967295
      %vm953 = vcmp.ne.s32.totalorder %v426, 4294967295
      %v954 = vmax.f32 %v938, -69.07755
      %v955 = vmax.f32 %v939, -69.07755
      %v956 = vmax.f32 %v940, -69.07755
      %v957 = vmax.f32 %v941, -69.07755
      %v958 = vmax.f32 %v942, -69.07755
      %v959 = vmax.f32 %v943, -69.07755
      %v960 = vmax.f32 %v944, -69.07755
      %v961 = vmax.f32 %v945, -69.07755
      %v962 = vsel %vm946, %v954, -69.07755
      %v963 = vsel %vm947, %v955, -69.07755
      %v964 = vsel %vm948, %v956, -69.07755
      %v965 = vsel %vm949, %v957, -69.07755
      %v966 = vsel %vm950, %v958, -69.07755
      %v967 = vsel %vm951, %v959, -69.07755
      %v968 = vsel %vm952, %v960, -69.07755
      %v969 = vsel %vm953, %v961, -69.07755
      %970 = vst.msk [vmem:[%s3] sm:$0xff] %vm707, %v962
      %971 = vst.msk [vmem:[%s3 + $0x8] sm:$0xff] %vm707, %v963
      %972 = vst.msk [vmem:[%s3 + $0x10] sm:$0xff] %vm707, %v964
      %973 = vst.msk [vmem:[%s3 + $0x18] sm:$0xff] %vm707, %v965
      %974 = vst.msk [vmem:[%s3 + $0x20] sm:$0xff] %vm707, %v966
      %975 = vst.msk [vmem:[%s3 + $0x28] sm:$0xff] %vm707, %v967
      %976 = vst.msk [vmem:[%s3 + $0x30] sm:$0xff] %vm707, %v968
      %977 = vst.msk [vmem:[%s3 + $0x38] sm:$0xff] %vm707, %v969
    $region25: #{tpu_custom_call.1} parent=1 // pred_fallthru
      _
    // Predicated region
    $region26: #{tpu_custom_call.1} parent=1 // pred_check
      _
    $region27: #{tpu_custom_call.1} parent=1 // pred_check_branch
      %979 = sbr.rel (0) target = $region29
    $region28: #{tpu_custom_call.1} parent=1 // pred_region
      _
    $region29: #{tpu_custom_call.1} parent=1 // pred_fallthru
      _
    // Predicated region
    $region30: #{tpu_custom_call.1} parent=1 // pred_check
      _
    $region31: #{tpu_custom_call.1} parent=1 // pred_check_branch
      %981 = sbr.rel (0) target = $region33
    $region32: #{tpu_custom_call.1} parent=1 // pred_region
      _
    $region33: #{tpu_custom_call.1} parent=1 // pred_fallthru
      _
    %982 = vsyncpa [#allocation6], 1

</llo_original>
